<compile_context>
chip_gen: v5e
topology: v5e:2x2
jax: 0.10.0
libtpu: 0.0.40
codegen_flags: <defaults>
</compile_context>

<pallas_src>
import math

import jax
import jax.numpy as jnp
from jax import lax
from jax.experimental import pallas as pl
from jax.experimental.pallas import tpu as pltpu


_BN_SCALE = 1.0 / math.sqrt(1.0 + 1e-5)   # eval BN, running stats (0,1), default affine
_MAX_TK = 512


def _round_up(x, m):
    return ((x + m - 1) // m) * m


# --------------------------- fused matmul kernel ----------------------------
#   out = epilogue( relu_in?(A) @ B )
#   epilogue: optional BN scale, optional ReLU, optional residual add;
#   all applied inside the kernel on the last k step (single HBM round trip).

def _make_mm_kernel(k_steps, relu_in, scale, relu_out, has_residual):
    def kernel(*refs):
        if has_residual:
            a_ref, b_ref, r_ref, o_ref = refs
        else:
            a_ref, b_ref, o_ref = refs
            r_ref = None

        a = a_ref[...]
        if relu_in:                      # ReLU on the conv *input*, fused as prologue
            a = jnp.maximum(a, 0.0)
        part = jnp.dot(a.astype(jnp.bfloat16), b_ref[...],
                       preferred_element_type=jnp.float32)

        def epilogue(r):
            if scale is not None:
                r = r * scale            # eval-mode BN
            if relu_out:
                r = jnp.maximum(r, 0.0)
            if r_ref is not None:
                r = r + r_ref[...]       # fused Node residual add
            return r

        if k_steps == 1:
            o_ref[...] = epilogue(part)
        else:
            @pl.when(pl.program_id(1) == 0)
            def _():
                o_ref[...] = jnp.zeros_like(o_ref)

            o_ref[...] += part           # accumulate directly in the resident output

            @pl.when(pl.program_id(1) == k_steps - 1)
            def _():
                o_ref[...] = epilogue(o_ref[...])

    return kernel


def fused_matmul(a, b, *, relu_in=False, scale=None, relu_out=False,
                 residual=None, tm=256):
    """A (M,K) f32  @  B (K,N) bf16  -> (M,N) f32 with fused conv epilogue."""
    M, K = a.shape
    Kb, N = b.shape
    assert K == Kb, (K, Kb)

    # K tiling: single block when K fits, else 256-wide accumulate steps.
    Kp = _round_up(K, 8)
    if Kp <= _MAX_TK:
        tk = Kp
    else:
        tk = 256
        Kp = _round_up(K, tk)
    k_steps = Kp // tk

    # N: keep the real (small) Cout; only bump to a multiple of 8 for lowering.
    Np = _round_up(N, 8)

    tm = min(tm, _round_up(M, 8))
    Mp = _round_up(M, tm)

    if Kp != K:
        a = jnp.pad(a, ((0, 0), (0, Kp - K)))
        b = jnp.pad(b, ((0, Kp - K), (0, 0)))
    if Np != N:
        b = jnp.pad(b, ((0, 0), (0, Np - N)))
    if Mp != M:
        a = jnp.pad(a, ((0, Mp - M), (0, 0)))

    operands = [a, b]
    in_specs = [pl.BlockSpec((tm, tk), lambda m, k: (m, k)),
                pl.BlockSpec((tk, Np), lambda m, k: (k, 0))]
    if residual is not None:
        r = residual.astype(jnp.float32)
        if Mp != M:
            r = jnp.pad(r, ((0, Mp - M), (0, 0)))
        if Np != N:
            r = jnp.pad(r, ((0, 0), (0, Np - N)))
        operands.append(r)
        in_specs.append(pl.BlockSpec((tm, Np), lambda m, k: (m, 0)))

    kernel = _make_mm_kernel(k_steps, relu_in, scale, relu_out,
                             residual is not None)
    out = pl.pallas_call(
        kernel,
        out_shape=jax.ShapeDtypeStruct((Mp, Np), jnp.float32),
        grid=(Mp // tm, k_steps),
        in_specs=in_specs,
        out_specs=pl.BlockSpec((tm, Np), lambda m, k: (m, 0)),
        compiler_params=pltpu.CompilerParams(
            dimension_semantics=("parallel", "arbitrary")),
    )(*operands)

    if Mp != M or Np != N:
        out = out[:M, :N]
    return out


# ---------------------------- tiled elementwise ------------------------------

def _eltwise(fn, *xs):
    shape = xs[0].shape
    dtype = xs[0].dtype
    L = xs[0].size
    rows = (L + 127) // 128
    br = min(1024, _round_up(rows, 8))
    rp = _round_up(rows, br)
    padded = [jnp.pad(x.reshape(-1), (0, rp * 128 - L)).reshape(rp, 128)
              for x in xs]

    def kernel(*refs):
        refs[-1][...] = fn(*(r[...] for r in refs[:-1]))

    out = pl.pallas_call(
        kernel,
        out_shape=jax.ShapeDtypeStruct((rp, 128), dtype),
        grid=(rp // br,),
        in_specs=[pl.BlockSpec((br, 128), lambda i: (i, 0))] * len(xs),
        out_specs=pl.BlockSpec((br, 128), lambda i: (i, 0)),
        compiler_params=pltpu.CompilerParams(
            dimension_semantics=("parallel",)),
    )(*padded)
    return out.reshape(-1)[:L].reshape(shape)


def pallas_add(x, y):
    return _eltwise(lambda a, b: a + b, x, y)


def pallas_sigmoid(x):
    return _eltwise(jax.nn.sigmoid, x)


# --------------------------- conv / pool / resize ----------------------------

def conv2d(x, wmat, kh, kw, cout, stride=1, padding=0,
           relu_in=False, scale=None, relu_out=False, residual=None):
    """x: (N,H,W,Cin) NHWC; wmat: (kh*kw*Cin, Cout) bf16 (pre-packed at init)."""
    N, H, W, C = x.shape
    Ho = (H + 2 * padding - kh) // stride + 1
    Wo = (W + 2 * padding - kw) // stride + 1
    if kh == 1 and kw == 1 and padding == 0:
        xs = x if stride == 1 else x[:, ::stride, ::stride, :]
        a = xs.reshape(N * Ho * Wo, C)
    else:
        # TODO(synk): im2col for k>1 stays host-side (NHWC concat, no transposes);
        # an in-kernel patch gather would remove the remaining k*k read amplification.
        xp = jnp.pad(x, ((0, 0), (padding, padding), (padding, padding), (0, 0)))
        cols = [xp[:, i:i + Ho * stride:stride, j:j + Wo * stride:stride, :]
                for i in range(kh) for j in range(kw)]
        a = jnp.concatenate(cols, axis=-1).reshape(N * Ho * Wo, kh * kw * C)
    res = None if residual is None else residual.reshape(N * Ho * Wo, cout)
    out = fused_matmul(a, wmat, relu_in=relu_in, scale=scale,
                       relu_out=relu_out, residual=res)
    return out.reshape(N, Ho, Wo, cout)


def conv_transpose2d_2x(x, wsub, cout, scale=None, relu_out=False):
    """ConvTranspose2d(k=3, s=2, p=1, out_p=1) as a 4-phase sub-pixel matmul.
    x: (N,H,W,Cin); wsub: (4*Cin, 4*Cout) combined phase weights (bf16)."""
    N, H, W, C = x.shape
    xp = jnp.pad(x, ((0, 0), (0, 1), (0, 1), (0, 0)))
    cols = [xp[:, a:a + H, b:b + W, :] for a in (0, 1) for b in (0, 1)]
    amat = jnp.concatenate(cols, axis=-1).reshape(N * H * W, 4 * C)
    out = fused_matmul(amat, wsub, scale=scale, relu_out=relu_out)
    out = out.reshape(N, H, W, 2, 2, cout)
    out = out.transpose(0, 1, 3, 2, 4, 5).reshape(N, 2 * H, 2 * W, cout)
    return out


def avg_pool(x, k, stride, pad):
    s = lax.reduce_window(x, 0.0, lax.add, (1, k, k, 1),
                          (1, stride, stride, 1),
                          ((0, 0), (pad, pad), (pad, pad), (0, 0)))
    return s / float(k * k)


def max_pool(x, k, stride, pad):
    return lax.reduce_window(x, -jnp.inf, lax.max, (1, k, k, 1),
                             (1, stride, stride, 1),
                             ((0, 0), (pad, pad), (pad, pad), (0, 0)))


def consistent_dim(states):
    h_max = max(s.shape[1] for s in states)
    w_max = max(s.shape[2] for s in states)
    out = []
    for s in states:
        if s.shape[1] == h_max and s.shape[2] == w_max:
            out.append(s)
        else:
            out.append(jax.image.resize(
                s, (s.shape[0], h_max, w_max, s.shape[3]), method='nearest'))
    return out


def bilinear_align_corners(x, out_h, out_w):
    N, H, W, C = x.shape
    if (H, W) == (out_h, out_w):
        return x

    def coords(o, i):
        if o == 1:
            return jnp.zeros((1,), jnp.float32)
        return jnp.arange(o, dtype=jnp.float32) * ((i - 1) / (o - 1))

    ys, xs = coords(out_h, H), coords(out_w, W)
    y0 = jnp.floor(ys).astype(jnp.int32)
    y1 = jnp.clip(y0 + 1, 0, H - 1)
    x0 = jnp.floor(xs).astype(jnp.int32)
    x1 = jnp.clip(x0 + 1, 0, W - 1)
    wy = (ys - y0.astype(jnp.float32))[None, :, None, None]
    wx = (xs - x0.astype(jnp.float32))[None, None, :, None]
    top = x[:, y0, :, :] * (1 - wy) + x[:, y1, :, :] * wy
    return top[:, :, x0, :] * (1 - wx) + top[:, :, x1, :] * wx


# --------------------------- parameter generation ----------------------------

class Init:
    """Deterministic kaiming_normal_ initializer (mirrors init_parameters).
    Weights are pre-reshaped to matmul layout and pre-cast to bf16 at init."""

    def __init__(self, seed=0):
        self._key = jax.random.PRNGKey(seed)

    def _conv(self, kh, kw, c_in, c_out):
        self._key, sub = jax.random.split(self._key)
        std = math.sqrt(2.0 / (c_in * kh * kw))
        return std * jax.random.normal(sub, (kh, kw, c_in, c_out), jnp.float32)

    def conv_mat(self, kh, kw, c_in, c_out):
        w = self._conv(kh, kw, c_in, c_out)
        return w.reshape(kh * kw * c_in, c_out).astype(jnp.bfloat16)

    def conv_transpose_mat(self, c_in, c_out):
        # Combined 4-phase sub-pixel weight (4*Cin, 4*Cout) for k=3, s=2 convT.
        w = self._conv(3, 3, c_in, c_out)        # forward-equivalent 3x3 kernel
        wsub = jnp.zeros((2, 2, c_in, 2, 2, c_out), jnp.float32)
        # tap (ta,tb) of the 2x2 input neighbourhood -> output phase (pa,pb)
        taps = {
            (0, 0): {(0, 0): (1, 1), (0, 1): (1, 0), (1, 0): (0, 1), (1, 1): (0, 0)},
            (0, 1): {(0, 1): (1, 2), (1, 1): (0, 2)},
            (1, 0): {(1, 0): (2, 1), (1, 1): (2, 0)},
            (1, 1): {(1, 1): (2, 2)},
        }
        for (ta, tb), phases in taps.items():
            for (pa, pb), (di, dj) in phases.items():
                wsub = wsub.at[ta, tb, :, pa, pb, :].set(w[di, dj])
        return wsub.reshape(4 * c_in, 4 * c_out).astype(jnp.bfloat16)


# --------------------------------- modules -----------------------------------

class ConvNet:
    def __init__(self, init, ch_in, ch_out, kernel_size=3, stride=1,
                 affine=True, transpose=False, op_type='ops', dropout_rate=0.0):
        self.k = kernel_size
        self.stride = stride
        self.transpose = transpose
        self.op_type = op_type
        self.ch_out = ch_out
        if transpose and op_type == 'ops':
            self.wmat = init.conv_transpose_mat(ch_in, ch_out)
        else:
            self.wmat = init.conv_mat(kernel_size, kernel_size, ch_in, ch_out)

    def __call__(self, x):
        if self.op_type == 'pre_ops':                 # Conv -> BN -> ReLU
            return conv2d(x, self.wmat, self.k, self.k, self.ch_out,
                          stride=self.stride, padding=self.k // 2,
                          scale=_BN_SCALE, relu_out=True)
        if self.op_type == 'pre_ops_cell':            # ReLU -> Conv -> BN
            return conv2d(x, self.wmat, self.k, self.k, self.ch_out,
                          stride=self.stride, padding=self.k // 2,
                          relu_in=True, scale=_BN_SCALE)
        if self.op_type == 'ops' and self.transpose:  # ConvT(s=2) -> BN -> ReLU
            return conv_transpose2d_2x(x, self.wmat, self.ch_out,
                                       scale=_BN_SCALE, relu_out=True)
        if self.op_type == 'SC':                      # dropout(keep=1) -> 1x1 conv
            # TODO(synk): Cout=classes is lane-narrow; could be folded into the
            # previous cell's epilogue, but it is a single tiny matmul.
            return conv2d(x, self.wmat, self.k, self.k, self.ch_out,
                          stride=self.stride, padding=self.k // 2)
        raise ValueError(self.op_type)


class WSIdentity:
    def __init__(self, init, num_inputs, c_in, c_out):
        pass

    def __call__(self, x, x_id, stride):
        return x if stride == 1 else avg_pool(x, stride, stride, 0)


class WSReLUConvBN:
    def __init__(self, init, num_inputs, c_in, c_out, k):
        self.k = k
        self.c_out = c_out
        self.wmats = [init.conv_mat(k, k, c_in, c_out) for _ in range(num_inputs)]

    def out_shape(self, in_shape, stride):
        n, h, w, _ = in_shape
        ho = (h + 2 * (self.k // 2) - self.k) // stride + 1
        wo = (w + 2 * (self.k // 2) - self.k) // stride + 1
        return (n, ho, wo, self.c_out)

    def __call__(self, x, x_id, stride, residual=None):
        return conv2d(x, self.wmats[x_id], self.k, self.k, self.c_out,
                      stride=stride, padding=self.k // 2,
                      relu_in=True, scale=_BN_SCALE, residual=residual)


class WSAvgPool:
    def __init__(self, init, num_inputs, c_in, c_out):
        pass

    def __call__(self, x, x_id, stride):
        return avg_pool(x, 3, stride, 1)


class WSMaxPool:
    def __init__(self, init, num_inputs, c_in, c_out):
        pass

    def __call__(self, x, x_id, stride):
        return max_pool(x, 3, stride, 1)


def build_ops(init, num_inputs, channels):
    return [WSIdentity(init, num_inputs, channels, channels),
            WSReLUConvBN(init, num_inputs, channels, channels, 3),
            WSReLUConvBN(init, num_inputs, channels, channels, 5),
            WSAvgPool(init, num_inputs, channels, channels),
            WSMaxPool(init, num_inputs, channels, channels)]


class Node:
    def __init__(self, init, search_space, channels, node_id, stride,
                 transpose=False):
        num_inputs = node_id + 2
        self.stride = stride
        self.transpose = transpose
        self.x_op = build_ops(init, num_inputs, channels)
        self.y_op = build_ops(init, num_inputs, channels)

    def __call__(self, x, x_id, x_op, y, y_id, y_op):
        if self.transpose:
            sx = sy = 1
        else:
            sx = self.stride if x_id in (0, 1) else 1
            sy = self.stride if y_id in (0, 1) else 1
        x_mod, y_mod = self.x_op[x_op], self.y_op[y_op]

        # Fuse the node's residual add into a conv epilogue whenever one branch
        # is a conv and the two branch outputs already agree in shape.
        if isinstance(x_mod, WSReLUConvBN):
            y_out = y_mod(y, y_id, sy)
            if x_mod.out_shape(x.shape, sx) == y_out.shape:
                return x_mod(x, x_id, sx, residual=y_out)
            x_out = x_mod(x, x_id, sx)
        elif isinstance(y_mod, WSReLUConvBN):
            x_out = x_mod(x, x_id, sx)
            if y_mod.out_shape(y.shape, sy) == x_out.shape:
                return y_mod(y, y_id, sy, residual=x_out)
            y_out = y_mod(y, y_id, sy)
        else:
            x_out = x_mod(x, x_id, sx)
            y_out = y_mod(y, y_id, sy)
        x_out, y_out = consistent_dim([x_out, y_out])
        return pallas_add(x_out, y_out)


class CellDown:
    def __init__(self, init, search_space, ch_prev_2, ch_prev, nodes, channels):
        self.nodes = nodes
        self.preprocess0 = ConvNet(init, ch_prev_2, channels, 1, stride=2,
                                   affine=False, op_type='pre_ops_cell')
        self.preprocess1 = ConvNet(init, ch_prev, channels, 1, stride=1,
                                   affine=False, op_type='pre_ops_cell')
        self.ops = [Node(init, search_space, channels, i, 2)
                    for i in range(nodes)]

    def __call__(self, s0, s1, arch):
        s0 = self.preprocess0(s0)
        s1 = self.preprocess1(s1)
        states = [s0, s1]
        for i in range(self.nodes):
            x_id, x_op, y_id, y_op = arch[4 * i:4 * i + 4]
            states.append(self.ops[i](states[x_id], x_id, x_op,
                                      states[y_id], y_id, y_op))
        return jnp.concatenate(states[-self.nodes:], axis=-1)


class CellUp:
    def __init__(self, init, search_space, ch_prev_2, ch_prev, nodes, channels):
        self.nodes = nodes
        self.preprocess0 = ConvNet(init, ch_prev_2, channels, 1, stride=1,
                                   affine=False, op_type='pre_ops_cell')
        self.preprocess1 = ConvNet(init, ch_prev, channels * 4, 1, stride=1,
                                   affine=False, op_type='pre_ops_cell')
        self.preprocess1_ = ConvNet(init, channels * 4, channels, 3, stride=2,
                                    affine=False, transpose=True, op_type='ops')
        self.ops = [Node(init, search_space, channels, i, 1, transpose=True)
                    for i in range(nodes)]

    def __call__(self, s0, s1, arch):
        s0 = self.preprocess0(s0)
        s1 = self.preprocess1(s1)
        s1 = self.preprocess1_(s1)
        states = [s0, s1]
        for i in range(self.nodes):
            x_id, x_op, y_id, y_op = arch[4 * i:4 * i + 4]
            states.append(self.ops[i](states[x_id], x_id, x_op,
                                      states[y_id], y_id, y_op))
        return jnp.concatenate(states[-self.nodes:], axis=-1)


class NASUNetSegmentationWS:
    def __init__(self, args, depth=4, classes=2, nodes=5, input_chs=3, chs=16,
                 keep_prob=1, double_down_channel=False, use_aux_head=False,
                 seed=0):
        init = Init(seed)
        self.depth = depth
        self.classes = classes
        self.nodes = nodes
        self.multiplier = nodes
        search_space = args.search_space

        ch_prev_2, ch_prev, ch_curr = nodes * chs, nodes * chs, chs
        self._stem0 = ConvNet(init, input_chs, ch_prev_2, 1, op_type='pre_ops')
        self._stem1 = ConvNet(init, input_chs, ch_prev, 3, stride=2,
                              op_type='pre_ops')
        self.cells_down, self.cells_up = [], []
        path_recorder = [ch_prev, ch_prev_2]
        for _ in range(depth):
            ch_curr = 2 * ch_curr if double_down_channel else ch_curr
            self.cells_down.append(
                CellDown(init, search_space, ch_prev_2, ch_prev, nodes, ch_curr))
            ch_prev_2, ch_prev = ch_prev, self.multiplier * ch_curr
            path_recorder.append(ch_prev)
        for i in range(depth + 1):
            ch_prev_2 = path_recorder[-(i + 2)]
            self.cells_up.append(
                CellUp(init, search_space, ch_prev_2, ch_prev, nodes, ch_curr))
            ch_prev = self.multiplier * ch_curr
            ch_curr = ch_curr // 2 if double_down_channel else ch_curr
        # use_aux_head=False path of the reference
        self.conv_seg = ConvNet(init, ch_prev, classes, 1,
                                dropout_rate=1 - keep_prob, op_type='SC')

    def __call__(self, x, arch):
        _, _, h, w = x.shape
        x = jnp.transpose(x, (0, 2, 3, 1))            # NCHW -> NHWC (once)
        s0, s1 = self._stem0(x), self._stem1(x)
        rec = [s0, s1]
        down_arch, up_arch = arch
        for cell in self.cells_down:
            s0, s1 = s1, cell(s0, s1, down_arch)
            rec.append(s1)
        for i, cell in enumerate(self.cells_up):
            s0 = rec[-(i + 2)]
            s1 = cell(s0, s1, up_arch)
        out = self.conv_seg(s1)
        out = bilinear_align_corners(out, h, w)
        out = pallas_sigmoid(out)
        return jnp.transpose(out, (0, 3, 1, 2))       # NHWC -> NCHW


# ----------------------------------- main ------------------------------------

if __name__ == "__main__":
    class Args:
        search_space = 'without_mor_ops'

    key = jax.random.PRNGKey(0)
    x = jax.random.normal(key, (2, 3, 16, 16), jnp.float32)

    # small config: depth=1 (1 down cell, 2 up cells), 2 intermediate nodes,
    # 8 base channels, 2 output classes
    model = NASUNetSegmentationWS(Args(), depth=1, classes=2, nodes=2,
                                  input_chs=3, chs=8, seed=0)

    # arch entries: (x_id, x_op, y_id, y_op) per node
    down_arch = [0, 1, 1, 3,   2, 1, 0, 0]
    up_arch = [1, 1, 0, 0,   2, 1, 1, 3]

    out = model(x, (down_arch, up_arch))
    out = jax.block_until_ready(out)
    assert out.shape == (2, 2, 16, 16), out.shape
    assert bool(jnp.all(jnp.isfinite(out)))
    print("KERNEL_OK")
</pallas_src>

<mosaic_0001>
module attributes {stable_mosaic.version = 11 : i64} {
  func.func @kernel(%arg0: i32, %arg1: i32, %arg2: memref<256x8xf32, #tpu.memory_space<vmem>>, %arg3: memref<8x16xbf16, #tpu.memory_space<vmem>>, %arg4: memref<256x16xf32, #tpu.memory_space<vmem>>) attributes {dimension_semantics = [#tpu.dimension_semantics<parallel>, #tpu.dimension_semantics<arbitrary>], iteration_bounds = array<i64: 2, 1>, scalar_prefetch = 0 : i64, scratch_operands = 0 : i64, tpu.core_type = #tpu.core_type<tc>, window_params = [{transform_indices = @transform_0, window_bounds = array<i64: 256, 8>}, {transform_indices = @transform_1, window_bounds = array<i64: 8, 16>}, {transform_indices = @transform_2, window_bounds = array<i64: 256, 16>}]} {
    %c0 = arith.constant 0 : index
    %c0_0 = arith.constant 0 : index
    %0 = vector.load %arg2[%c0, %c0_0] : memref<256x8xf32, #tpu.memory_space<vmem>>, vector<256x8xf32>
    %1 = arith.truncf %0 : vector<256x8xf32> to vector<256x8xbf16>
    %c0_1 = arith.constant 0 : index
    %c0_2 = arith.constant 0 : index
    %2 = vector.load %arg3[%c0_1, %c0_2] : memref<8x16xbf16, #tpu.memory_space<vmem>>, vector<8x16xbf16>
    %cst = arith.constant dense<0.000000e+00> : vector<256x16xf32>
    %3 = tpu.matmul %1, %2, %cst {dimension_numbers = #tpu.dot_dimension_numbers<[1], [0], [0], [1], [0, 0, 1, 1], [], []>} : vector<256x8xbf16>, vector<8x16xbf16>, vector<256x16xf32> -> vector<256x16xf32>
    %cst_3 = arith.constant 0.999994993 : f32
    %4 = vector.broadcast %cst_3 : f32 to vector<256x16xf32>
    %5 = arith.mulf %3, %4 : vector<256x16xf32>
    %cst_4 = arith.constant 0.000000e+00 : f32
    %6 = vector.broadcast %cst_4 : f32 to vector<256x16xf32>
    %7 = arith.maximumf %5, %6 : vector<256x16xf32>
    %c0_5 = arith.constant 0 : index
    %c0_6 = arith.constant 0 : index
    %8 = vector.load %arg4[%c0_5, %c0_6] : memref<256x16xf32, #tpu.memory_space<vmem>>, vector<256x16xf32>
    tpu.vector_store %arg4[%c0_5, %c0_6], %7 {strides = array<i32>} : memref<256x16xf32, #tpu.memory_space<vmem>>, vector<256x16xf32>,
    return
  }
  func.func @transform_0(%arg0: i32, %arg1: i32) -> (i32, i32) {
    %c0_i32 = arith.constant 0 : i32
    return %arg0, %arg1 : i32, i32
  }
  func.func @transform_1(%arg0: i32, %arg1: i32) -> (i32, i32) {
    %c0_i32 = arith.constant 0 : i32
    %c0_i32_0 = arith.constant 0 : i32
    return %arg1, %c0_i32 : i32, i32
  }
  func.func @transform_2(%arg0: i32, %arg1: i32) -> (i32, i32) {
    %c0_i32 = arith.constant 0 : i32
    %c0_i32_0 = arith.constant 0 : i32
    return %arg0, %c0_i32 : i32, i32
  }
}

</mosaic_0001>

<llo_original>
// kernel: tpu_custom_call.1
$region0: #{tpu_custom_call.1}
  #allocation0 [shape = 'u32[]', space=smem, size = 0x4, offset = 0x4, fixed_abs, tag = 'smem constant byte address 0x4 - core index']
  #allocation1 [shape = 'u32[72,128]{1,0:T(1,128)}', space=vmem, size = 0x9000, scoped, tag = 'internal scratch']
  %s0 = inlined_call_operand.vmem [shape: f32[512,8], index: 0, kind: input, shape index: {}]
  %s1 = inlined_call_operand.vmem [shape: bf16[8,16], index: 1, kind: input, shape index: {}]
  %s2 = inlined_call_operand.vmem [shape: f32[512,16], index: 2, kind: output, shape index: {}]
  %s3 = sld [smem:[#allocation0]]
  $region41: #{tpu_custom_call.1} parent=0
    _
  %s5 = ssub.s32 1, %s3
  %s6 = scalar_select 0, %s5, %s3
  loop: start=0, step=1, limit=4
  $region2: #{tpu_custom_call.1} parent=0 // loop_pre_header
    _
  $region3: #{tpu_custom_call.1} parent=0 // loop_header
    %s8 = sphi 0, %s12
    %p9 = scmp.ge.s32.totalorder %s8, 4
    %s15 = sphi 0, %s27
    %s16 = sphi 0, %s23
    %s17 = sphi 0, %s15
    %s18 = sphi 0, %s16
    %s19 = sphi 0, %s17
    %s20 = sphi 0, %s18
    %s32 = sphi 0, %s34
    %s35 = sphi 0, %s32
    %s36 = sphi 0, %s35
    %s52 = sphi 0, %s36
    %s58 = sphi 0, %s60
    %s61 = sphi 0, %s58
    %s62 = sphi 0, %s61
    %s78 = sphi 0, %s62
    %s84 = sphi 0, %s86
    %s87 = sphi 0, %s84
    %s88 = sphi 0, %s87
    %s104 = sphi 0, %s88
  $region4: #{tpu_custom_call.1} parent=0 // loop_header_branch
    %11 = sbr.rel (%p9) target = $region8
  $region5: #{tpu_custom_call.1} parent=0 // loop_body
    %s13 = ssub.s32 %s8, 1
    %s14 = ssub.s32 %s8, 2
    %s21 = sadd.s32 1, %s16
    %p22 = scmp.ge.s32.totalorder %s21, 1
    %s23 = scalar_select %p22, 0, %s21
    %s24 = sadd.s32 1, %s15
    %s25 = scalar_select %p22, %s24, %s15
    %p26 = scmp.ge.s32.totalorder %s25, 2
    %s27 = scalar_select %p26, 0, %s25
    %s28 = ssub.s32 %s15, %s27
    %s29 = ssub.s32 %s16, %s23
    %s30 = sor.u32 %s28, %s29
    %p31 = scmp.eq.s32.totalorder %s30, 0
    %s33 = sadd.s32 %s32, 1
    %s34 = scalar_select %p31, %s32, %s33
    %p37 = pneg %p31
    %p38 = scmp.eq.s32.totalorder %s8, 1
    %p39 = por %p37, %p38
    %p40 = scmp.ne.s32.totalorder %s32, %s35
    %p41 = scmp.eq.s32.totalorder %s8, 0
    %p42 = por %p40, %p41
    %p43 = scmp.ne.s32.totalorder %s32, %s35
    %p44 = scmp.eq.s32.totalorder %s13, 1
    %p45 = por %p43, %p44
    %p46 = scmp.ne.s32.totalorder %s35, %s36
    %p47 = scmp.eq.s32.totalorder %s13, 0
    %p48 = por %p46, %p47
    %p49 = scmp.ne.s32.totalorder %s35, %s36
    %p50 = scmp.eq.s32.totalorder %s14, 1
    %p51 = por %p49, %p50
    %p53 = scmp.ne.s32.totalorder %s36, %s52
    %p54 = scmp.eq.s32.totalorder %s14, 0
    %p55 = por %p53, %p54
    %s56 = ssub.s32 %s16, %s23
    %p57 = scmp.eq.s32.totalorder %s56, 0
    %s59 = sadd.s32 %s58, 1
    %s60 = scalar_select %p57, %s58, %s59
    %p63 = pneg %p57
    %p64 = scmp.eq.s32.totalorder %s8, 1
    %p65 = por %p63, %p64
    %p66 = scmp.ne.s32.totalorder %s58, %s61
    %p67 = scmp.eq.s32.totalorder %s8, 0
    %p68 = por %p66, %p67
    %p69 = scmp.ne.s32.totalorder %s58, %s61
    %p70 = scmp.eq.s32.totalorder %s13, 1
    %p71 = por %p69, %p70
    %p72 = scmp.ne.s32.totalorder %s61, %s62
    %p73 = scmp.eq.s32.totalorder %s13, 0
    %p74 = por %p72, %p73
    %p75 = scmp.ne.s32.totalorder %s61, %s62
    %p76 = scmp.eq.s32.totalorder %s14, 1
    %p77 = por %p75, %p76
    %p79 = scmp.ne.s32.totalorder %s62, %s78
    %p80 = scmp.eq.s32.totalorder %s14, 0
    %p81 = por %p79, %p80
    %s82 = ssub.s32 %s15, %s27
    %p83 = scmp.eq.s32.totalorder %s82, 0
    %s85 = sadd.s32 %s84, 1
    %s86 = scalar_select %p83, %s84, %s85
    %p89 = pneg %p83
    %p90 = scmp.eq.s32.totalorder %s8, 1
    %p91 = por %p89, %p90
    %p92 = scmp.ne.s32.totalorder %s84, %s87
    %p93 = scmp.eq.s32.totalorder %s8, 0
    %p94 = por %p92, %p93
    %p95 = scmp.ne.s32.totalorder %s84, %s87
    %p96 = scmp.eq.s32.totalorder %s13, 1
    %p97 = por %p95, %p96
    %p98 = scmp.ne.s32.totalorder %s87, %s88
    %p99 = scmp.eq.s32.totalorder %s13, 0
    %p100 = por %p98, %p99
    %p101 = scmp.ne.s32.totalorder %s87, %s88
    %p102 = scmp.eq.s32.totalorder %s14, 1
    %p103 = por %p101, %p102
    %p105 = scmp.ne.s32.totalorder %s88, %s104
    %p106 = scmp.eq.s32.totalorder %s14, 0
    %p107 = por %p105, %p106
    %p108 = scmp.le.s32.totalorder 1, %s8
    %p109 = scmp.lt.s32.totalorder %s8, 3
    %p110 = pnand %p108, %p109
    %p111 = pneg %p110
    // Predicated region
    $region9: #{tpu_custom_call.1} parent=5 // pred_check
      _
    $region10: #{tpu_custom_call.1} parent=5 // pred_check_branch
      %113 = sbr.rel (%p110) target = $region12
    $region11: #{tpu_custom_call.1} parent=5 // pred_region
      %s114 = ssub.s32 %s8, 1
      // Predicated region
      $region13: #{tpu_custom_call.1} parent=11 // pred_check
        %p115 = pneg %p74
      $region14: #{tpu_custom_call.1} parent=11 // pred_check_branch
        %117 = sbr.rel (%p115) target = $region16
      $region15: #{tpu_custom_call.1} parent=11 // pred_region
        %p118 = scmp.lt.s32.totalorder %s18, 0
        %s119 = scalar_select %p118, %s18, 0
        %s120 = smul.addr %s119, 4
        %s121 = scalar_lea.vmem %s1, %s120
      $region16: #{tpu_custom_call.1} parent=11 // pred_fallthru
        _
    $region12: #{tpu_custom_call.1} parent=5 // pred_fallthru
      _
    %p122 = scmp.lt.s32.totalorder %s8, 2
    // Predicated region
    $region17: #{tpu_custom_call.1} parent=5 // pred_check
      %p123 = pneg %p122
    $region18: #{tpu_custom_call.1} parent=5 // pred_check_branch
      %125 = sbr.rel (%p123) target = $region20
    $region19: #{tpu_custom_call.1} parent=5 // pred_region
      // Predicated region
      $region21: #{tpu_custom_call.1} parent=19 // pred_check
        %p126 = pneg %p42
      $region22: #{tpu_custom_call.1} parent=19 // pred_check_branch
        %128 = sbr.rel (%p126) target = $region24
      $region23: #{tpu_custom_call.1} parent=19 // pred_region
        %s129 = smul.u32 32, %s15
        %p130 = scmp.lt.s32.totalorder %s129, 63
        %s131 = scalar_select %p130, %s129, 63
        %p132 = scmp.lt.s32.totalorder %s16, 0
        %s133 = scalar_select %p132, %s16, 0
        %s134 = sadd.s32 %s133, %s131
        %s135 = smul.addr %s134, 8
        %s136 = scalar_lea.vmem %s0, %s135
        %s137 = smul.u32 32, %s15
      $region24: #{tpu_custom_call.1} parent=19 // pred_fallthru
        _
    $region20: #{tpu_custom_call.1} parent=5 // pred_fallthru
      _
    %p138 = scmp.le.s32.totalorder 1, %s8
    %p139 = scmp.lt.s32.totalorder %s8, 3
    %p140 = pnand %p138, %p139
    %p141 = pneg %p140
    // Predicated region
    $region25: #{tpu_custom_call.1} parent=5 // pred_check
      _
    $region26: #{tpu_custom_call.1} parent=5 // pred_check_branch
      %143 = sbr.rel (%p140) target = $region28
    $region27: #{tpu_custom_call.1} parent=5 // pred_region
      %s144 = ssub.s32 %s8, 1
      %s145 = smul.u32 32, %s17
      %p146 = scmp.lt.s32.totalorder %s145, 63
      %s147 = scalar_select %p146, %s145, 63
      %p148 = scmp.lt.s32.totalorder %s18, 0
      %s149 = scalar_select %p148, %s18, 0
      %s150 = sadd.s32 %s149, %s147
      %s151 = smul.addr %s150, 8
      %s152 = scalar_lea.vmem %s0, %s151
      %p153 = pneg %p48
      %p154 = pneg %p45
      %p155 = scmp.lt.s32.totalorder %s18, 0
      %s156 = scalar_select %p155, %s18, 0
      %s157 = smul.addr %s156, 4
      %s158 = scalar_lea.vmem %s1, %s157
      %p159 = pneg %p74
      %p160 = pneg %p71
      %p161 = pneg %p100
      %p162 = pneg %p97
      %s163 = smul.u32 32, %s17
      %p164 = scmp.lt.s32.totalorder %s163, 63
      %s165 = scalar_select %p164, %s163, 63
      %s166 = smul.addr %s165, 8
      %s167 = scalar_lea.vmem %s2, %s166
      %s168 = smul.u32 32, %s17
      %p169 = scmp.lt.s32.totalorder %s168, 63
      %s170 = scalar_select %p169, %s168, 63
      %p171 = scmp.lt.s32.totalorder %s18, 0
      %s172 = scalar_select %p171, %s18, 0
      %s173 = sadd.s32 %s172, %s170
      %s174 = smul.addr %s173, 8
      %s175 = scalar_lea.vmem %s0, %s174
      %s176 = smul.u32 32, %s17
      %p177 = scmp.lt.s32.totalorder %s18, 0
      %s178 = scalar_select %p177, %s18, 0
      %s179 = smul.addr %s178, 4
      %s180 = scalar_lea.vmem %s1, %s179
      %s181 = smul.u32 32, %s17
      %p182 = scmp.lt.s32.totalorder %s181, 63
      %s183 = scalar_select %p182, %s181, 63
      %s184 = smul.addr %s183, 8
      %s185 = scalar_lea.vmem %s2, %s184
      %s186 = smul.u32 32, %s17
      %v188 = vld [vmem:[%s175] sm:$0xff]
      %v189 = vld [vmem:[%s175 + $0x8] sm:$0xff]
      %v190 = vld [vmem:[%s175 + $0x10] sm:$0xff]
      %v191 = vld [vmem:[%s175 + $0x18] sm:$0xff]
      %v192 = vld [vmem:[%s175 + $0x20] sm:$0xff]
      %v193 = vld [vmem:[%s175 + $0x28] sm:$0xff]
      %v194 = vld [vmem:[%s175 + $0x30] sm:$0xff]
      %v195 = vld [vmem:[%s175 + $0x38] sm:$0xff]
      %v196 = vld [vmem:[%s175 + $0x40] sm:$0xff]
      %v197 = vld [vmem:[%s175 + $0x48] sm:$0xff]
      %v198 = vld [vmem:[%s175 + $0x50] sm:$0xff]
      %v199 = vld [vmem:[%s175 + $0x58] sm:$0xff]
      %v200 = vld [vmem:[%s175 + $0x60] sm:$0xff]
      %v201 = vld [vmem:[%s175 + $0x68] sm:$0xff]
      %v202 = vld [vmem:[%s175 + $0x70] sm:$0xff]
      %v203 = vld [vmem:[%s175 + $0x78] sm:$0xff]
      %v204 = vld [vmem:[%s175 + $0x80] sm:$0xff]
      %v205 = vld [vmem:[%s175 + $0x88] sm:$0xff]
      %v206 = vld [vmem:[%s175 + $0x90] sm:$0xff]
      %v207 = vld [vmem:[%s175 + $0x98] sm:$0xff]
      %v208 = vld [vmem:[%s175 + $0xa0] sm:$0xff]
      %v209 = vld [vmem:[%s175 + $0xa8] sm:$0xff]
      %v210 = vld [vmem:[%s175 + $0xb0] sm:$0xff]
      %v211 = vld [vmem:[%s175 + $0xb8] sm:$0xff]
      %v212 = vld [vmem:[%s175 + $0xc0] sm:$0xff]
      %v213 = vld [vmem:[%s175 + $0xc8] sm:$0xff]
      %v214 = vld [vmem:[%s175 + $0xd0] sm:$0xff]
      %v215 = vld [vmem:[%s175 + $0xd8] sm:$0xff]
      %v216 = vld [vmem:[%s175 + $0xe0] sm:$0xff]
      %v217 = vld [vmem:[%s175 + $0xe8] sm:$0xff]
      %v218 = vld [vmem:[%s175 + $0xf0] sm:$0xff]
      %v219 = vld [vmem:[%s175 + $0xf8] sm:$0xff]
      %v220 = vpack.c.bf16 %v189, %v188
      %v221 = vpack.c.bf16 %v191, %v190
      %v222 = vpack.c.bf16 %v193, %v192
      %v223 = vpack.c.bf16 %v195, %v194
      %v224 = vpack.c.bf16 %v197, %v196
      %v225 = vpack.c.bf16 %v199, %v198
      %v226 = vpack.c.bf16 %v201, %v200
      %v227 = vpack.c.bf16 %v203, %v202
      %v228 = vpack.c.bf16 %v205, %v204
      %v229 = vpack.c.bf16 %v207, %v206
      %v230 = vpack.c.bf16 %v209, %v208
      %v231 = vpack.c.bf16 %v211, %v210
      %v232 = vpack.c.bf16 %v213, %v212
      %v233 = vpack.c.bf16 %v215, %v214
      %v234 = vpack.c.bf16 %v217, %v216
      %v235 = vpack.c.bf16 %v219, %v218
      %v236 = vld [vmem:[%s180] sm:$0xf]
      %vm237 = vcmask 64512
      %v239 = vsel %vm237, %v220, 0
      %v242 = vsel %vm237, %v221, 0
      %v245 = vsel %vm237, %v222, 0
      %v248 = vsel %vm237, %v223, 0
      %v251 = vsel %vm237, %v224, 0
      %v254 = vsel %vm237, %v225, 0
      %v257 = vsel %vm237, %v226, 0
      %v260 = vsel %vm237, %v227, 0
      %v263 = vsel %vm237, %v228, 0
      %v266 = vsel %vm237, %v229, 0
      %v269 = vsel %vm237, %v230, 0
      %v272 = vsel %vm237, %v231, 0
      %v275 = vsel %vm237, %v232, 0
      %v278 = vsel %vm237, %v233, 0
      %v281 = vsel %vm237, %v234, 0
      %v284 = vsel %vm237, %v235, 0
      %vm286 = vcmask 1043456
      %v288 = vsel %vm286, %v236, 0
      %290 = vmatpush.bf16.msra.mxu0 0
      %291 = vmatpush.bf16.msra.mxu0 0
      %292 = vmatpush.bf16.msra.mxu0 0
      %293 = vmatpush.bf16.msra.mxu0 0
      %294 = vmatpush.bf16.msra.mxu0 0
      %295 = vmatpush.bf16.msra.mxu0 0
      %296 = vmatpush.bf16.msra.mxu0 0
      %297 = vmatpush.bf16.msra.mxu0 %v288
      %298 = vmatmul.bf16.gmra.mxu0 %v239
      %v299 = vpop.f32.mrf.mxu0
      %v300 = vadd.f32 0.0, %v299
      %v301 = vpop.f32.mrf.mxu0
      %v302 = vadd.f32 0.0, %v301
      %303 = vmatmul.bf16.gmra.mxu0 %v242
      %v304 = vpop.f32.mrf.mxu0
      %v305 = vadd.f32 0.0, %v304
      %v306 = vpop.f32.mrf.mxu0
      %v307 = vadd.f32 0.0, %v306
      %308 = vmatmul.bf16.gmra.mxu0 %v245
      %v309 = vpop.f32.mrf.mxu0
      %v310 = vadd.f32 0.0, %v309
      %v311 = vpop.f32.mrf.mxu0
      %v312 = vadd.f32 0.0, %v311
      %313 = vmatmul.bf16.gmra.mxu0 %v248
      %v314 = vpop.f32.mrf.mxu0
      %v315 = vadd.f32 0.0, %v314
      %v316 = vpop.f32.mrf.mxu0
      %v317 = vadd.f32 0.0, %v316
      %318 = vmatmul.bf16.gmra.mxu0 %v251
      %v319 = vpop.f32.mrf.mxu0
      %v320 = vadd.f32 0.0, %v319
      %v321 = vpop.f32.mrf.mxu0
      %v322 = vadd.f32 0.0, %v321
      %323 = vmatmul.bf16.gmra.mxu0 %v254
      %v324 = vpop.f32.mrf.mxu0
      %v325 = vadd.f32 0.0, %v324
      %v326 = vpop.f32.mrf.mxu0
      %v327 = vadd.f32 0.0, %v326
      %328 = vmatmul.bf16.gmra.mxu0 %v257
      %v329 = vpop.f32.mrf.mxu0
      %v330 = vadd.f32 0.0, %v329
      %v331 = vpop.f32.mrf.mxu0
      %v332 = vadd.f32 0.0, %v331
      %333 = vmatmul.bf16.gmra.mxu0 %v260
      %v334 = vpop.f32.mrf.mxu0
      %v335 = vadd.f32 0.0, %v334
      %v336 = vpop.f32.mrf.mxu0
      %v337 = vadd.f32 0.0, %v336
      %338 = vmatmul.bf16.gmra.mxu0 %v263
      %v339 = vpop.f32.mrf.mxu0
      %v340 = vadd.f32 0.0, %v339
      %v341 = vpop.f32.mrf.mxu0
      %v342 = vadd.f32 0.0, %v341
      %343 = vmatmul.bf16.gmra.mxu0 %v266
      %v344 = vpop.f32.mrf.mxu0
      %v345 = vadd.f32 0.0, %v344
      %v346 = vpop.f32.mrf.mxu0
      %v347 = vadd.f32 0.0, %v346
      %348 = vmatmul.bf16.gmra.mxu0 %v269
      %v349 = vpop.f32.mrf.mxu0
      %v350 = vadd.f32 0.0, %v349
      %v351 = vpop.f32.mrf.mxu0
      %v352 = vadd.f32 0.0, %v351
      %353 = vmatmul.bf16.gmra.mxu0 %v272
      %v354 = vpop.f32.mrf.mxu0
      %v355 = vadd.f32 0.0, %v354
      %v356 = vpop.f32.mrf.mxu0
      %v357 = vadd.f32 0.0, %v356
      %358 = vmatmul.bf16.gmra.mxu0 %v275
      %v359 = vpop.f32.mrf.mxu0
      %v360 = vadd.f32 0.0, %v359
      %v361 = vpop.f32.mrf.mxu0
      %v362 = vadd.f32 0.0, %v361
      %363 = vmatmul.bf16.gmra.mxu0 %v278
      %v364 = vpop.f32.mrf.mxu0
      %v365 = vadd.f32 0.0, %v364
      %v366 = vpop.f32.mrf.mxu0
      %v367 = vadd.f32 0.0, %v366
      %368 = vmatmul.bf16.gmra.mxu0 %v281
      %v369 = vpop.f32.mrf.mxu0
      %v370 = vadd.f32 0.0, %v369
      %v371 = vpop.f32.mrf.mxu0
      %v372 = vadd.f32 0.0, %v371
      %373 = vmatmul.bf16.gmra.mxu0 %v284
      %v374 = vpop.f32.mrf.mxu0
      %v375 = vadd.f32 0.0, %v374
      %v376 = vpop.f32.mrf.mxu0
      %v377 = vadd.f32 0.0, %v376
      %378 = vdwg.mxu0
      %v379 = vmul.f32 %v300, 0.999995
      %v380 = vmul.f32 %v302, 0.999995
      %v381 = vmul.f32 %v305, 0.999995
      %v382 = vmul.f32 %v307, 0.999995
      %v383 = vmul.f32 %v310, 0.999995
      %v384 = vmul.f32 %v312, 0.999995
      %v385 = vmul.f32 %v315, 0.999995
      %v386 = vmul.f32 %v317, 0.999995
      %v387 = vmul.f32 %v320, 0.999995
      %v388 = vmul.f32 %v322, 0.999995
      %v389 = vmul.f32 %v325, 0.999995
      %v390 = vmul.f32 %v327, 0.999995
      %v391 = vmul.f32 %v330, 0.999995
      %v392 = vmul.f32 %v332, 0.999995
      %v393 = vmul.f32 %v335, 0.999995
      %v394 = vmul.f32 %v337, 0.999995
      %v395 = vmul.f32 %v340, 0.999995
      %v396 = vmul.f32 %v342, 0.999995
      %v397 = vmul.f32 %v345, 0.999995
      %v398 = vmul.f32 %v347, 0.999995
      %v399 = vmul.f32 %v350, 0.999995
      %v400 = vmul.f32 %v352, 0.999995
      %v401 = vmul.f32 %v355, 0.999995
      %v402 = vmul.f32 %v357, 0.999995
      %v403 = vmul.f32 %v360, 0.999995
      %v404 = vmul.f32 %v362, 0.999995
      %v405 = vmul.f32 %v365, 0.999995
      %v406 = vmul.f32 %v367, 0.999995
      %v407 = vmul.f32 %v370, 0.999995
      %v408 = vmul.f32 %v372, 0.999995
      %v409 = vmul.f32 %v375, 0.999995
      %v410 = vmul.f32 %v377, 0.999995
      %v411 = vmax.f32 %v379, 0.0
      %v412 = vmax.f32 %v380, 0.0
      %v413 = vmax.f32 %v381, 0.0
      %v414 = vmax.f32 %v382, 0.0
      %v415 = vmax.f32 %v383, 0.0
      %v416 = vmax.f32 %v384, 0.0
      %v417 = vmax.f32 %v385, 0.0
      %v418 = vmax.f32 %v386, 0.0
      %v419 = vmax.f32 %v387, 0.0
      %v420 = vmax.f32 %v388, 0.0
      %v421 = vmax.f32 %v389, 0.0
      %v422 = vmax.f32 %v390, 0.0
      %v423 = vmax.f32 %v391, 0.0
      %v424 = vmax.f32 %v392, 0.0
      %v425 = vmax.f32 %v393, 0.0
      %v426 = vmax.f32 %v394, 0.0
      %v427 = vmax.f32 %v395, 0.0
      %v428 = vmax.f32 %v396, 0.0
      %v429 = vmax.f32 %v397, 0.0
      %v430 = vmax.f32 %v398, 0.0
      %v431 = vmax.f32 %v399, 0.0
      %v432 = vmax.f32 %v400, 0.0
      %v433 = vmax.f32 %v401, 0.0
      %v434 = vmax.f32 %v402, 0.0
      %v435 = vmax.f32 %v403, 0.0
      %v436 = vmax.f32 %v404, 0.0
      %v437 = vmax.f32 %v405, 0.0
      %v438 = vmax.f32 %v406, 0.0
      %v439 = vmax.f32 %v407, 0.0
      %v440 = vmax.f32 %v408, 0.0
      %v441 = vmax.f32 %v409, 0.0
      %v442 = vmax.f32 %v410, 0.0
      %vm443 = vcmask 130048
      %444 = vst.msk [vmem:[%s185] sm:$0xff] %vm443, %v411
      %445 = vst.msk [vmem:[%s185 + $0x8] sm:$0xff] %vm443, %v412
      %446 = vst.msk [vmem:[%s185 + $0x10] sm:$0xff] %vm443, %v413
      %447 = vst.msk [vmem:[%s185 + $0x18] sm:$0xff] %vm443, %v414
      %448 = vst.msk [vmem:[%s185 + $0x20] sm:$0xff] %vm443, %v415
      %449 = vst.msk [vmem:[%s185 + $0x28] sm:$0xff] %vm443, %v416
      %450 = vst.msk [vmem:[%s185 + $0x30] sm:$0xff] %vm443, %v417
      %451 = vst.msk [vmem:[%s185 + $0x38] sm:$0xff] %vm443, %v418
      %452 = vst.msk [vmem:[%s185 + $0x40] sm:$0xff] %vm443, %v419
      %453 = vst.msk [vmem:[%s185 + $0x48] sm:$0xff] %vm443, %v420
      %454 = vst.msk [vmem:[%s185 + $0x50] sm:$0xff] %vm443, %v421
      %455 = vst.msk [vmem:[%s185 + $0x58] sm:$0xff] %vm443, %v422
      %456 = vst.msk [vmem:[%s185 + $0x60] sm:$0xff] %vm443, %v423
      %457 = vst.msk [vmem:[%s185 + $0x68] sm:$0xff] %vm443, %v424
      %458 = vst.msk [vmem:[%s185 + $0x70] sm:$0xff] %vm443, %v425
      %459 = vst.msk [vmem:[%s185 + $0x78] sm:$0xff] %vm443, %v426
      %460 = vst.msk [vmem:[%s185 + $0x80] sm:$0xff] %vm443, %v427
      %461 = vst.msk [vmem:[%s185 + $0x88] sm:$0xff] %vm443, %v428
      %462 = vst.msk [vmem:[%s185 + $0x90] sm:$0xff] %vm443, %v429
      %463 = vst.msk [vmem:[%s185 + $0x98] sm:$0xff] %vm443, %v430
      %464 = vst.msk [vmem:[%s185 + $0xa0] sm:$0xff] %vm443, %v431
      %465 = vst.msk [vmem:[%s185 + $0xa8] sm:$0xff] %vm443, %v432
      %466 = vst.msk [vmem:[%s185 + $0xb0] sm:$0xff] %vm443, %v433
      %467 = vst.msk [vmem:[%s185 + $0xb8] sm:$0xff] %vm443, %v434
      %468 = vst.msk [vmem:[%s185 + $0xc0] sm:$0xff] %vm443, %v435
      %469 = vst.msk [vmem:[%s185 + $0xc8] sm:$0xff] %vm443, %v436
      %470 = vst.msk [vmem:[%s185 + $0xd0] sm:$0xff] %vm443, %v437
      %471 = vst.msk [vmem:[%s185 + $0xd8] sm:$0xff] %vm443, %v438
      %472 = vst.msk [vmem:[%s185 + $0xe0] sm:$0xff] %vm443, %v439
      %473 = vst.msk [vmem:[%s185 + $0xe8] sm:$0xff] %vm443, %v440
      %474 = vst.msk [vmem:[%s185 + $0xf0] sm:$0xff] %vm443, %v441
      %475 = vst.msk [vmem:[%s185 + $0xf8] sm:$0xff] %vm443, %v442
      %s476 = smul.u32 32, %s17
      %p477 = scmp.lt.s32.totalorder %s476, 63
      %s478 = scalar_select %p477, %s476, 63
      %s479 = smul.addr %s478, 8
      %s480 = scalar_lea.vmem %s2, %s479
      // Predicated region
      $region29: #{tpu_custom_call.1} parent=27 // pred_check
        %p481 = pneg %p97
      $region30: #{tpu_custom_call.1} parent=27 // pred_check_branch
        %483 = sbr.rel (%p481) target = $region32
      $region31: #{tpu_custom_call.1} parent=27 // pred_region
        %s484 = smul.u32 32, %s17
      $region32: #{tpu_custom_call.1} parent=27 // pred_fallthru
        _
    $region28: #{tpu_custom_call.1} parent=5 // pred_fallthru
      _
    %p485 = scmp.le.s32.totalorder 2, %s8
    // Predicated region
    $region33: #{tpu_custom_call.1} parent=5 // pred_check
      %p486 = pneg %p485
    $region34: #{tpu_custom_call.1} parent=5 // pred_check_branch
      %488 = sbr.rel (%p486) target = $region36
    $region35: #{tpu_custom_call.1} parent=5 // pred_region
      %s489 = ssub.s32 %s8, 2
      // Predicated region
      $region37: #{tpu_custom_call.1} parent=35 // pred_check
        %p490 = pneg %p103
      $region38: #{tpu_custom_call.1} parent=35 // pred_check_branch
        %492 = sbr.rel (%p490) target = $region40
      $region39: #{tpu_custom_call.1} parent=35 // pred_region
        %s493 = smul.u32 32, %s19
        %p494 = scmp.lt.s32.totalorder %s493, 63
        %s495 = scalar_select %p494, %s493, 63
        %s496 = smul.addr %s495, 8
        %s497 = scalar_lea.vmem %s2, %s496
      $region40: #{tpu_custom_call.1} parent=35 // pred_fallthru
        _
    $region36: #{tpu_custom_call.1} parent=5 // pred_fallthru
      _
  $region6: #{tpu_custom_call.1} parent=0 // loop_footer
    %s12 = sadd.s32 1, %s8
  $region7: #{tpu_custom_call.1} parent=0 // loop_footer_branch
    %7 = sbr.rel target = $region3
  $region8: #{tpu_custom_call.1} parent=0 // loop_exit
    _

</llo_original>
